<compile_context>
chip_gen: v7x
topology: tpu7x:2x2x1
jax: 0.10.0
libtpu: 0.0.40
codegen_flags: <defaults>
</compile_context>

<pallas_src>
import math
from typing import Dict, Optional, Tuple, Union

import numpy as np
import jax
import jax.numpy as jnp
from jax.experimental import pallas as pl
from jax.experimental.pallas import tpu as pltpu


# ---------------------------------------------------------------------------
# Small helpers
# ---------------------------------------------------------------------------
def _round_up(x: int, m: int) -> int:
    return ((x + m - 1) // m) * m


def _choose_tile(hw_pad: int) -> int:
    # Tiles <= 512 keep 2x double-buffered bf16 blocks + f32 accumulator at
    # ~3 MiB, well under the scoped VMEM limit on v5e/v6e/v7x.
    for t in (512, 256, 128):
        if hw_pad % t == 0:
            return t
    return 128


def _choose_tm(nc: int) -> int:
    if nc <= 256:
        return max(16, _round_up(nc, 16))  # bf16 sublane packing
    return 256


# ---------------------------------------------------------------------------
# Pallas kernel: tiled  out = x @ S_T  with f32 accumulator + sparse-tile skip
# ---------------------------------------------------------------------------
def _rotate_matmul_kernel(mask_ref, x_ref, s_ref, o_ref, acc_ref):
    j = pl.program_id(1)
    k = pl.program_id(2)
    n_k = pl.num_programs(2)

    @pl.when(k == 0)
    def _init():
        acc_ref[...] = jnp.zeros_like(acc_ref)

    # Skip MXU work (and accumulate) on all-zero S_T tiles.
    @pl.when(mask_ref[j * n_k + k] != 0)
    def _accumulate():
        acc_ref[...] += jnp.dot(
            x_ref[...], s_ref[...], preferred_element_type=jnp.float32
        )

    @pl.when(k == n_k - 1)
    def _store():
        o_ref[...] = acc_ref[...].astype(o_ref.dtype)


def _apply_sampling(x_pad: jax.Array, s_t: jax.Array, mask_flat: jax.Array,
                    tm: int, tile: int) -> jax.Array:
    nc_pad, hw_pad = x_pad.shape
    n_m = nc_pad // tm
    n_n = hw_pad // tile
    n_k = hw_pad // tile
    return pl.pallas_call(
        _rotate_matmul_kernel,
        out_shape=jax.ShapeDtypeStruct((nc_pad, hw_pad), jnp.float32),
        grid_spec=pltpu.PrefetchScalarGridSpec(
            num_scalar_prefetch=1,
            grid=(n_m, n_n, n_k),
            in_specs=[
                pl.BlockSpec((tm, tile), lambda i, j, k, m: (i, k)),
                pl.BlockSpec((tile, tile), lambda i, j, k, m: (k, j)),
            ],
            out_specs=pl.BlockSpec((tm, tile), lambda i, j, k, m: (i, j)),
            scratch_shapes=[pltpu.VMEM((tm, tile), jnp.float32)],
        ),
        compiler_params=pltpu.CompilerParams(
            dimension_semantics=("parallel", "parallel", "arbitrary")
        ),
    )(mask_flat, x_pad, s_t)


# ---------------------------------------------------------------------------
# Host-side glue: build + cache the bilinear rotation sampling matrix (bf16)
# and its block-sparsity tile mask.
# ---------------------------------------------------------------------------
_SAMPLING_CACHE = {}


def _get_sampling(H: int, W: int, angle_deg: float, hw_pad: int, tile: int):
    key = (H, W, float(angle_deg), hw_pad, tile)
    hit = _SAMPLING_CACHE.get(key)
    if hit is not None:
        return hit

    theta = math.radians(angle_deg)
    cos_t, sin_t = math.cos(theta), math.sin(theta)
    cy, cx = (H - 1) / 2.0, (W - 1) / 2.0

    yo, xo = np.meshgrid(np.arange(H, dtype=np.float64),
                         np.arange(W, dtype=np.float64), indexing="ij")
    dx = xo - cx
    dy = yo - cy
    # inverse rotation (output pixel -> source coordinate), CCW-positive angle
    xi = cos_t * dx + sin_t * dy + cx
    yi = -sin_t * dx + cos_t * dy + cy

    x0 = np.floor(xi)
    y0 = np.floor(yi)
    x1 = x0 + 1.0
    y1 = y0 + 1.0
    wx1 = xi - x0
    wx0 = 1.0 - wx1
    wy1 = yi - y0
    wy0 = 1.0 - wy1

    HW = H * W
    out_idx = np.arange(HW)
    s_t = np.zeros((hw_pad, hw_pad), dtype=np.float32)  # [source px, output px]

    def add_corner(yc, xc, w):
        valid = (yc >= 0) & (yc <= H - 1) & (xc >= 0) & (xc <= W - 1)
        yci = np.clip(yc, 0, H - 1).astype(np.int64)
        xci = np.clip(xc, 0, W - 1).astype(np.int64)
        in_idx = (yci * W + xci).reshape(-1)
        wv = (w * valid).reshape(-1).astype(np.float32)
        np.add.at(s_t, (in_idx, out_idx), wv)

    add_corner(y0, x0, wy0 * wx0)
    add_corner(y0, x1, wy0 * wx1)
    add_corner(y1, x0, wy1 * wx0)
    add_corner(y1, x1, wy1 * wx1)

    n_k = hw_pad // tile
    n_n = hw_pad // tile
    tiles = s_t.reshape(n_k, tile, n_n, tile)
    mask = (np.abs(tiles) > 0.0).any(axis=(1, 3))                 # [k, j]
    mask_flat = np.ascontiguousarray(mask.T).reshape(-1).astype(np.int32)  # [j*n_k+k]

    s_t_dev = jnp.asarray(s_t, dtype=jnp.bfloat16)
    mask_dev = jnp.asarray(mask_flat)
    _SAMPLING_CACHE[key] = (s_t_dev, mask_dev)
    return s_t_dev, mask_dev


# ---------------------------------------------------------------------------
# Rotate a group of arrays that share the same spatial (H, W) in ONE kernel.
# ---------------------------------------------------------------------------
def _rotate_group(arrays, H: int, W: int, angle_deg: float):
    HW = H * W
    lead_shapes = [a.shape[:-2] for a in arrays]
    dtypes = [a.dtype for a in arrays]
    rows = [int(np.prod(s, dtype=np.int64)) if len(s) else 1 for s in lead_shapes]

    flat = [a.reshape(r, HW) for a, r in zip(arrays, rows)]
    x = jnp.concatenate(flat, axis=0).astype(jnp.bfloat16)
    nc = x.shape[0]

    tm = _choose_tm(nc)
    nc_pad = _round_up(nc, tm)
    hw_pad = _round_up(HW, 128)
    tile = _choose_tile(hw_pad)

    s_t, mask_flat = _get_sampling(H, W, angle_deg, hw_pad, tile)

    x_pad = jnp.pad(x, ((0, nc_pad - nc), (0, hw_pad - HW)))
    out = _apply_sampling(x_pad, s_t, mask_flat, tm, tile)
    out = out[:nc, :HW]

    results = []
    off = 0
    for r, lead, dt in zip(rows, lead_shapes, dtypes):
        results.append(out[off:off + r].reshape(*lead, H, W).astype(dt))
        off += r
    return results


def rotate_image_nchw(x: jax.Array, angle_deg: float) -> jax.Array:
    """Rotate an NCHW image batch by angle_deg (CCW, bilinear, zero pad)."""
    H, W = int(x.shape[-2]), int(x.shape[-1])
    return _rotate_group([x], H, W, angle_deg)[0]


# ---------------------------------------------------------------------------
# Module-equivalent wrapper: applies rotation to every entry of the dict(s).
# All entries with the same spatial shape are fused into one pallas_call.
# ---------------------------------------------------------------------------
class Rotate:
    def __init__(self, angle: float):
        self.angle = float(angle)

    def __call__(
        self, inputs: Dict, outputs: Optional[Dict] = None
    ) -> Union[Dict, Tuple[Dict, Dict]]:
        dicts = [inputs] + ([outputs] if outputs is not None else [])

        groups = {}
        for d_idx, d in enumerate(dicts):
            for name, arr in d.items():
                H, W = int(arr.shape[-2]), int(arr.shape[-1])
                groups.setdefault((H, W), []).append((d_idx, name, arr))

        for (H, W), items in groups.items():
            arrays = [arr for _, _, arr in items]
            rotated = _rotate_group(arrays, H, W, self.angle)
            for (d_idx, name, _), r in zip(items, rotated):
                dicts[d_idx][name] = r

        return (inputs, outputs) if outputs is not None else inputs


if __name__ == "__main__":
    key = jax.random.PRNGKey(0)
    k1, k2 = jax.random.split(key)

    # small shapes consistent with the module's image-transform semantics
    x_in = jax.random.normal(k1, (2, 4, 16, 16), dtype=jnp.float32)   # NCHW
    x_out = jax.random.normal(k2, (2, 4, 16, 16), dtype=jnp.float32)  # NCHW

    rot = Rotate(angle=30.0)
    inputs = {"rgb": x_in}
    outputs = {"mask": x_out}

    res_in, res_out = rot(inputs, outputs)
    jax.block_until_ready(res_in["rgb"])
    jax.block_until_ready(res_out["mask"])
    assert res_in["rgb"].shape == (2, 4, 16, 16)
    assert res_out["mask"].shape == (2, 4, 16, 16)

    # sanity 1: rotating by 0 degrees is identity up to bf16 rounding of x
    ident = rotate_image_nchw(x_in, 0.0)
    jax.block_until_ready(ident)
    assert jnp.allclose(ident, x_in, atol=3e-2), "0-degree rotation must be ~identity"

    # sanity 2: Pallas tiled/sparse matmul matches a dense JAX matmul with the
    # same sampling matrix (validates tiling, accumulation and mask skipping).
    H = W = 16
    HW = H * W
    hw_pad = _round_up(HW, 128)
    tile = _choose_tile(hw_pad)
    s_t, _ = _get_sampling(H, W, 30.0, hw_pad, tile)
    xf = x_in.reshape(-1, HW).astype(jnp.bfloat16).astype(jnp.float32)
    ref = jnp.dot(jnp.pad(xf, ((0, 0), (0, hw_pad - HW))), s_t.astype(jnp.float32))
    ref = ref[:, :HW].reshape(2, 4, H, W)
    jax.block_until_ready(ref)
    assert jnp.allclose(res_in["rgb"], ref, atol=1e-2, rtol=1e-2), \
        "Pallas rotation must match dense sampling-matrix reference"

    print("KERNEL_OK")
</pallas_src>

<mosaic_0001>
module attributes {stable_mosaic.version = 11 : i64} {
  func.func @_rotate_matmul_kernel(%arg0: i32, %arg1: i32, %arg2: i32, %arg3: memref<1xi32, #tpu.memory_space<smem>>, %arg4: memref<16x256xbf16, #tpu.memory_space<vmem>>, %arg5: memref<256x256xbf16, #tpu.memory_space<vmem>>, %arg6: memref<16x256xf32, #tpu.memory_space<vmem>>, %arg7: memref<16x256xf32, #tpu.memory_space<vmem>>) attributes {dimension_semantics = [#tpu.dimension_semantics<parallel>, #tpu.dimension_semantics<parallel>, #tpu.dimension_semantics<arbitrary>], iteration_bounds = array<i64: 1, 1, 1>, scalar_prefetch = 1 : i64, scratch_operands = 1 : i64, tpu.core_type = #tpu.core_type<tc>, window_params = [{transform_indices = @transform_0, window_bounds = array<i64: 16, 256>}, {transform_indices = @transform_1, window_bounds = array<i64: 256, 256>}, {transform_indices = @transform_2, window_bounds = array<i64: 16, 256>}]} {
    %c0_i32 = arith.constant 0 : i32
    %0 = arith.cmpi eq, %arg2, %c0_i32 : i32
    %1 = arith.extui %0 : i1 to i32
    %c0_i32_0 = arith.constant 0 : i32
    %2 = arith.cmpi ne, %1, %c0_i32_0 : i32
    scf.if %2 {
      %cst = arith.constant 0.000000e+00 : f32
      %13 = vector.broadcast %cst : f32 to vector<16x256xf32>
      %c0 = arith.constant 0 : index
      %c0_5 = arith.constant 0 : index
      %14 = vector.load %arg7[%c0, %c0_5] : memref<16x256xf32, #tpu.memory_space<vmem>>, vector<16x256xf32>
      tpu.vector_store %arg7[%c0, %c0_5], %13 {strides = array<i32>} : memref<16x256xf32, #tpu.memory_space<vmem>>, vector<16x256xf32>,
    } else {
    }
    %c1_i32 = arith.constant 1 : i32
    %3 = arith.muli %arg1, %c1_i32 : i32
    %4 = arith.addi %3, %arg2 : i32
    %5 = arith.index_cast %4 : i32 to index
    %6 = memref.load %arg3[%5] : memref<1xi32, #tpu.memory_space<smem>>
    %c0_i32_1 = arith.constant 0 : i32
    %7 = arith.cmpi ne, %6, %c0_i32_1 : i32
    %8 = arith.extui %7 : i1 to i32
    %c0_i32_2 = arith.constant 0 : i32
    %9 = arith.cmpi ne, %8, %c0_i32_2 : i32
    scf.if %9 {
      %c0 = arith.constant 0 : index
      %c0_5 = arith.constant 0 : index
      %13 = vector.load %arg7[%c0, %c0_5] : memref<16x256xf32, #tpu.memory_space<vmem>>, vector<16x256xf32>
      %c0_6 = arith.constant 0 : index
      %c0_7 = arith.constant 0 : index
      %14 = vector.load %arg4[%c0_6, %c0_7] : memref<16x256xbf16, #tpu.memory_space<vmem>>, vector<16x256xbf16>
      %c0_8 = arith.constant 0 : index
      %c0_9 = arith.constant 0 : index
      %15 = vector.load %arg5[%c0_8, %c0_9] : memref<256x256xbf16, #tpu.memory_space<vmem>>, vector<256x256xbf16>
      %cst = arith.constant dense<0.000000e+00> : vector<16x256xf32>
      %16 = tpu.matmul %14, %15, %cst {dimension_numbers = #tpu.dot_dimension_numbers<[1], [0], [0], [1], [0, 0, 1, 1], [], []>} : vector<16x256xbf16>, vector<256x256xbf16>, vector<16x256xf32> -> vector<16x256xf32>
      %17 = arith.addf %13, %16 : vector<16x256xf32>
      %c0_10 = arith.constant 0 : index
      %c0_11 = arith.constant 0 : index
      %18 = vector.load %arg7[%c0_10, %c0_11] : memref<16x256xf32, #tpu.memory_space<vmem>>, vector<16x256xf32>
      tpu.vector_store %arg7[%c0_10, %c0_11], %17 {strides = array<i32>} : memref<16x256xf32, #tpu.memory_space<vmem>>, vector<16x256xf32>,
    } else {
    }
    %c0_i32_3 = arith.constant 0 : i32
    %10 = arith.cmpi eq, %arg2, %c0_i32_3 : i32
    %11 = arith.extui %10 : i1 to i32
    %c0_i32_4 = arith.constant 0 : i32
    %12 = arith.cmpi ne, %11, %c0_i32_4 : i32
    scf.if %12 {
      %c0 = arith.constant 0 : index
      %c0_5 = arith.constant 0 : index
      %13 = vector.load %arg7[%c0, %c0_5] : memref<16x256xf32, #tpu.memory_space<vmem>>, vector<16x256xf32>
      %c0_6 = arith.constant 0 : index
      %c0_7 = arith.constant 0 : index
      %14 = vector.load %arg6[%c0_6, %c0_7] : memref<16x256xf32, #tpu.memory_space<vmem>>, vector<16x256xf32>
      tpu.vector_store %arg6[%c0_6, %c0_7], %13 {strides = array<i32>} : memref<16x256xf32, #tpu.memory_space<vmem>>, vector<16x256xf32>,
    } else {
    }
    return
  }
  func.func @transform_0(%arg0: i32, %arg1: i32, %arg2: i32, %arg3: memref<1xi32, #tpu.memory_space<smem>>) -> (i32, i32) {
    %c0_i32 = arith.constant 0 : i32
    return %arg0, %arg2 : i32, i32
  }
  func.func @transform_1(%arg0: i32, %arg1: i32, %arg2: i32, %arg3: memref<1xi32, #tpu.memory_space<smem>>) -> (i32, i32) {
    %c0_i32 = arith.constant 0 : i32
    return %arg2, %arg1 : i32, i32
  }
  func.func @transform_2(%arg0: i32, %arg1: i32, %arg2: i32, %arg3: memref<1xi32, #tpu.memory_space<smem>>) -> (i32, i32) {
    %c0_i32 = arith.constant 0 : i32
    return %arg0, %arg1 : i32, i32
  }
}

</mosaic_0001>

<llo_original>
// kernel: tpu_custom_call.1
$region0: #{tpu_custom_call.1}
  #allocation0 [shape = 'u32[]', space=smem, size = 0x4, offset = 0x4, fixed_abs, tag = 'smem constant byte address 0x4 - core index']
  #allocation1 [shape = 'u32[144,128]{1,0:T(1,128)}', space=vmem, size = 0x12000, scoped, tag = 'internal scratch']
  #allocation2 [shape = 'f32[16,256]{1,0:T(8,128)}', space=vmem, size = 0x4000, scoped, tag = 'scratch operand']
  #allocation3 [shape = 's32[1]{0}', space=sflag, size = 0x4, scoped, tag = 'scoped memory for tpu_custom_call.1']
  #allocation4 [shape = 's32[1]{0:T(128)S(6)}', space=smem, size = 0x200, scoped, tag = 'prefetched SMEM operand 0']
  %s0 = inlined_call_operand.<no memory space> [shape: s32[1], index: 0, kind: input, shape index: {}]
  %s1 = inlined_call_operand.hbm [shape: bf16[16,256], index: 1, kind: input, shape index: {}]
  %s2 = inlined_call_operand.hbm [shape: bf16[256,256], index: 2, kind: input, shape index: {}]
  %s3 = inlined_call_operand.hbm [shape: f32[16,256], index: 3, kind: output, shape index: {}]
  %s4 = sld [smem:[#allocation0]]
  $region38: #{tpu_custom_call.1} parent=0
    _
  %s6 = ssub.s32 1, %s4
  %s7 = scalar_select 0, %s6, %s4
  %8 = sst [smem:[#allocation4]] %s0
  $region1: #{tpu_custom_call.1} parent=0
    #allocation5 [shape = 'u8[8192]{0}', space=vmem, size = 0x2000, scoped, tag = 'input window, operand 1, single buffered']
    #allocation6 [shape = 's32[1]{0}', space=sflag, size = 0x4, scoped, tag = 'scoped memory for tpu_custom_call.1']
    #allocation7 [shape = 's32[1]{0}', space=sflag, size = 0x4, scoped, tag = 'scoped memory for tpu_custom_call.1']
    #allocation8 [shape = 'u8[131072]{0}', space=vmem, size = 0x20000, scoped, tag = 'input window, operand 2, single buffered']
    #allocation9 [shape = 's32[1]{0}', space=sflag, size = 0x4, scoped, tag = 'scoped memory for tpu_custom_call.1']
    #allocation10 [shape = 'u8[16384]{0}', space=vmem, size = 0x4000, scoped, tag = 'output window, operand 0, single buffered']
    %9 = vsyncpa [#allocation6], 0
    %10 = vsyncpa [#allocation9], 0
    %11 = vsyncpa [#allocation7], 0
    // Predicated region
    $region2: #{tpu_custom_call.1} parent=1 // pred_check
      _
    $region3: #{tpu_custom_call.1} parent=1 // pred_check_branch
      %13 = sbr.rel (0) target = $region5
    $region4: #{tpu_custom_call.1} parent=1 // pred_region
      %s15 = ssub.s32 256, 256
      %16 = vsyncadd [#allocation6], %s15
      %s17 = sshll.u32 [#allocation5], 4
      %s18 = int_to_ptr.vmem [resolvable:$true] %s17
      %23 = dma.hbm_to_vmem [thread:$0]  %s1, 256, %s18, [#allocation6], 128, 128, 8
    $region5: #{tpu_custom_call.1} parent=1 // pred_fallthru
      _
    // Predicated region
    $region6: #{tpu_custom_call.1} parent=1 // pred_check
      _
    $region7: #{tpu_custom_call.1} parent=1 // pred_check_branch
      %25 = sbr.rel (0) target = $region9
    $region8: #{tpu_custom_call.1} parent=1 // pred_region
      %s27 = ssub.s32 4096, 4096
      %28 = vsyncadd [#allocation9], %s27
      %s29 = sshll.u32 [#allocation8], 4
      %s30 = int_to_ptr.vmem [resolvable:$true] %s29
      %35 = dma.hbm_to_vmem [thread:$0]  %s2, 4096, %s30, [#allocation9], 128, 128, 8
    $region9: #{tpu_custom_call.1} parent=1 // pred_fallthru
      _
    // Predicated region
    $region10: #{tpu_custom_call.1} parent=1 // pred_check
      _
    $region11: #{tpu_custom_call.1} parent=1 // pred_check_branch
      %37 = sbr.rel (0) target = $region13
    $region12: #{tpu_custom_call.1} parent=1 // pred_region
      %38 = dma.done [#allocation6], 256
    $region13: #{tpu_custom_call.1} parent=1 // pred_fallthru
      _
    // Predicated region
    $region14: #{tpu_custom_call.1} parent=1 // pred_check
      _
    $region15: #{tpu_custom_call.1} parent=1 // pred_check_branch
      %40 = sbr.rel (0) target = $region17
    $region16: #{tpu_custom_call.1} parent=1 // pred_region
      %41 = dma.done [#allocation9], 4096
    $region17: #{tpu_custom_call.1} parent=1 // pred_fallthru
      _
    %p42 = scmp.eq.s32.totalorder 0, 0
    // Predicated region
    $region18: #{tpu_custom_call.1} parent=1 // pred_check
      %p43 = pneg %p42
    $region19: #{tpu_custom_call.1} parent=1 // pred_check_branch
      %45 = sbr.rel (%p43) target = $region21
    $region20: #{tpu_custom_call.1} parent=1 // pred_region
      %46 = vst [vmem:[#allocation2] sm:$0xff] 0.0
      %47 = vst [vmem:[#allocation2 + $0x8] sm:$0xff] 0.0
      %48 = vst [vmem:[#allocation2 + $0x10] sm:$0xff] 0.0
      %49 = vst [vmem:[#allocation2 + $0x18] sm:$0xff] 0.0
    $region21: #{tpu_custom_call.1} parent=1 // pred_fallthru
      _
    %s50 = sadd.s32 0, 0
    %s51 = sld [smem:[#allocation4 + %s50]]
    %p52 = scmp.ne.s32.totalorder %s51, 0
    // Predicated region
    $region22: #{tpu_custom_call.1} parent=1 // pred_check
      %p53 = pneg %p52
    $region23: #{tpu_custom_call.1} parent=1 // pred_check_branch
      %55 = sbr.rel (%p53) target = $region25
    $region24: #{tpu_custom_call.1} parent=1 // pred_region
      %v56 = vld [vmem:[#allocation2] sm:$0xff]
      %v57 = vld [vmem:[#allocation2 + $0x8] sm:$0xff]
      %v58 = vld [vmem:[#allocation2 + $0x10] sm:$0xff]
      %v59 = vld [vmem:[#allocation2 + $0x18] sm:$0xff]
      %v60 = vld [vmem:[#allocation5] sm:$0xff]
      %v61 = vld [vmem:[#allocation5 + $0x8] sm:$0xff]
      %v62 = vld [vmem:[#allocation8] sm:$0xff]
      %v63 = vld [vmem:[#allocation8 + $0x8] sm:$0xff]
      %v64 = vld [vmem:[#allocation8 + $0x10] sm:$0xff]
      %v65 = vld [vmem:[#allocation8 + $0x18] sm:$0xff]
      %v66 = vld [vmem:[#allocation8 + $0x20] sm:$0xff]
      %v67 = vld [vmem:[#allocation8 + $0x28] sm:$0xff]
      %v68 = vld [vmem:[#allocation8 + $0x30] sm:$0xff]
      %v69 = vld [vmem:[#allocation8 + $0x38] sm:$0xff]
      %v70 = vld [vmem:[#allocation8 + $0x40] sm:$0xff]
      %v71 = vld [vmem:[#allocation8 + $0x48] sm:$0xff]
      %v72 = vld [vmem:[#allocation8 + $0x50] sm:$0xff]
      %v73 = vld [vmem:[#allocation8 + $0x58] sm:$0xff]
      %v74 = vld [vmem:[#allocation8 + $0x60] sm:$0xff]
      %v75 = vld [vmem:[#allocation8 + $0x68] sm:$0xff]
      %v76 = vld [vmem:[#allocation8 + $0x70] sm:$0xff]
      %v77 = vld [vmem:[#allocation8 + $0x78] sm:$0xff]
      %v78 = vld [vmem:[#allocation8 + $0x80] sm:$0xff]
      %v79 = vld [vmem:[#allocation8 + $0x88] sm:$0xff]
      %v80 = vld [vmem:[#allocation8 + $0x90] sm:$0xff]
      %v81 = vld [vmem:[#allocation8 + $0x98] sm:$0xff]
      %v82 = vld [vmem:[#allocation8 + $0xa0] sm:$0xff]
      %v83 = vld [vmem:[#allocation8 + $0xa8] sm:$0xff]
      %v84 = vld [vmem:[#allocation8 + $0xb0] sm:$0xff]
      %v85 = vld [vmem:[#allocation8 + $0xb8] sm:$0xff]
      %v86 = vld [vmem:[#allocation8 + $0xc0] sm:$0xff]
      %v87 = vld [vmem:[#allocation8 + $0xc8] sm:$0xff]
      %v88 = vld [vmem:[#allocation8 + $0xd0] sm:$0xff]
      %v89 = vld [vmem:[#allocation8 + $0xd8] sm:$0xff]
      %v90 = vld [vmem:[#allocation8 + $0xe0] sm:$0xff]
      %v91 = vld [vmem:[#allocation8 + $0xe8] sm:$0xff]
      %v92 = vld [vmem:[#allocation8 + $0xf0] sm:$0xff]
      %v93 = vld [vmem:[#allocation8 + $0xf8] sm:$0xff]
      %v96 = vunpack.c.l.b16 %v60
      %v97 = vunpack.c.h.b16 %v60
      %v98 = vunpack.c.l.b16 %v61
      %v99 = vunpack.c.h.b16 %v61
      %v100 = vpack.c.b16 %v98, %v96
      %v101 = vpack.c.b16 %v99, %v97
      %v136 = vunpack.c.l.b16 %v62
      %v137 = vunpack.c.h.b16 %v62
      %v138 = vunpack.c.l.b16 %v63
      %v139 = vunpack.c.h.b16 %v63
      %v140 = vunpack.c.l.b16 %v64
      %v141 = vunpack.c.h.b16 %v64
      %v142 = vunpack.c.l.b16 %v65
      %v143 = vunpack.c.h.b16 %v65
      %v144 = vunpack.c.l.b16 %v66
      %v145 = vunpack.c.h.b16 %v66
      %v146 = vunpack.c.l.b16 %v67
      %v147 = vunpack.c.h.b16 %v67
      %v148 = vunpack.c.l.b16 %v68
      %v149 = vunpack.c.h.b16 %v68
      %v150 = vunpack.c.l.b16 %v69
      %v151 = vunpack.c.h.b16 %v69
      %v152 = vunpack.c.l.b16 %v70
      %v153 = vunpack.c.h.b16 %v70
      %v154 = vunpack.c.l.b16 %v71
      %v155 = vunpack.c.h.b16 %v71
      %v156 = vunpack.c.l.b16 %v72
      %v157 = vunpack.c.h.b16 %v72
      %v158 = vunpack.c.l.b16 %v73
      %v159 = vunpack.c.h.b16 %v73
      %v160 = vunpack.c.l.b16 %v74
      %v161 = vunpack.c.h.b16 %v74
      %v162 = vunpack.c.l.b16 %v75
      %v163 = vunpack.c.h.b16 %v75
      %v164 = vunpack.c.l.b16 %v76
      %v165 = vunpack.c.h.b16 %v76
      %v166 = vunpack.c.l.b16 %v77
      %v167 = vunpack.c.h.b16 %v77
      %v168 = vunpack.c.l.b16 %v78
      %v169 = vunpack.c.h.b16 %v78
      %v170 = vunpack.c.l.b16 %v79
      %v171 = vunpack.c.h.b16 %v79
      %v172 = vunpack.c.l.b16 %v80
      %v173 = vunpack.c.h.b16 %v80
      %v174 = vunpack.c.l.b16 %v81
      %v175 = vunpack.c.h.b16 %v81
      %v176 = vunpack.c.l.b16 %v82
      %v177 = vunpack.c.h.b16 %v82
      %v178 = vunpack.c.l.b16 %v83
      %v179 = vunpack.c.h.b16 %v83
      %v180 = vunpack.c.l.b16 %v84
      %v181 = vunpack.c.h.b16 %v84
      %v182 = vunpack.c.l.b16 %v85
      %v183 = vunpack.c.h.b16 %v85
      %v184 = vunpack.c.l.b16 %v86
      %v185 = vunpack.c.h.b16 %v86
      %v186 = vunpack.c.l.b16 %v87
      %v187 = vunpack.c.h.b16 %v87
      %v188 = vunpack.c.l.b16 %v88
      %v189 = vunpack.c.h.b16 %v88
      %v190 = vunpack.c.l.b16 %v89
      %v191 = vunpack.c.h.b16 %v89
      %v192 = vunpack.c.l.b16 %v90
      %v193 = vunpack.c.h.b16 %v90
      %v194 = vunpack.c.l.b16 %v91
      %v195 = vunpack.c.h.b16 %v91
      %v196 = vunpack.c.l.b16 %v92
      %v197 = vunpack.c.h.b16 %v92
      %v198 = vunpack.c.l.b16 %v93
      %v199 = vunpack.c.h.b16 %v93
      %v200 = vpack.c.b16 %v138, %v136
      %v201 = vpack.c.b16 %v139, %v137
      %v202 = vpack.c.b16 %v142, %v140
      %v203 = vpack.c.b16 %v143, %v141
      %v204 = vpack.c.b16 %v146, %v144
      %v205 = vpack.c.b16 %v147, %v145
      %v206 = vpack.c.b16 %v150, %v148
      %v207 = vpack.c.b16 %v151, %v149
      %v208 = vpack.c.b16 %v154, %v152
      %v209 = vpack.c.b16 %v155, %v153
      %v210 = vpack.c.b16 %v158, %v156
      %v211 = vpack.c.b16 %v159, %v157
      %v212 = vpack.c.b16 %v162, %v160
      %v213 = vpack.c.b16 %v163, %v161
      %v214 = vpack.c.b16 %v166, %v164
      %v215 = vpack.c.b16 %v167, %v165
      %v216 = vpack.c.b16 %v170, %v168
      %v217 = vpack.c.b16 %v171, %v169
      %v218 = vpack.c.b16 %v174, %v172
      %v219 = vpack.c.b16 %v175, %v173
      %v220 = vpack.c.b16 %v178, %v176
      %v221 = vpack.c.b16 %v179, %v177
      %v222 = vpack.c.b16 %v182, %v180
      %v223 = vpack.c.b16 %v183, %v181
      %v224 = vpack.c.b16 %v186, %v184
      %v225 = vpack.c.b16 %v187, %v185
      %v226 = vpack.c.b16 %v190, %v188
      %v227 = vpack.c.b16 %v191, %v189
      %v228 = vpack.c.b16 %v194, %v192
      %v229 = vpack.c.b16 %v195, %v193
      %v230 = vpack.c.b16 %v198, %v196
      %v231 = vpack.c.b16 %v199, %v197
      %264 = vmatprep.subr.bf16.mxu0 %v201
      %265 = vmatpush1.bf16.msra.mxu0 %v200
      %266 = vmatprep.subr.bf16.mxu0 %v203
      %267 = vmatpush1.bf16.msra.mxu0 %v202
      %268 = vmatprep.subr.bf16.mxu0 %v205
      %269 = vmatpush1.bf16.msra.mxu0 %v204
      %270 = vmatprep.subr.bf16.mxu0 %v207
      %271 = vmatpush1.bf16.msra.mxu0 %v206
      %272 = vmatprep.subr.bf16.mxu0 %v209
      %273 = vmatpush1.bf16.msra.mxu0 %v208
      %274 = vmatprep.subr.bf16.mxu0 %v211
      %275 = vmatpush1.bf16.msra.mxu0 %v210
      %276 = vmatprep.subr.bf16.mxu0 %v213
      %277 = vmatpush1.bf16.msra.mxu0 %v212
      %278 = vmatprep.subr.bf16.mxu0 %v215
      %279 = vmatpush1.bf16.msra.mxu0 %v214
      %280 = vmatprep.subr.bf16.mxu0 %v217
      %281 = vmatpush1.bf16.msra.mxu0 %v216
      %282 = vmatprep.subr.bf16.mxu0 %v219
      %283 = vmatpush1.bf16.msra.mxu0 %v218
      %284 = vmatprep.subr.bf16.mxu0 %v221
      %285 = vmatpush1.bf16.msra.mxu0 %v220
      %286 = vmatprep.subr.bf16.mxu0 %v223
      %287 = vmatpush1.bf16.msra.mxu0 %v222
      %288 = vmatprep.subr.bf16.mxu0 %v225
      %289 = vmatpush1.bf16.msra.mxu0 %v224
      %290 = vmatprep.subr.bf16.mxu0 %v227
      %291 = vmatpush1.bf16.msra.mxu0 %v226
      %292 = vmatprep.subr.bf16.mxu0 %v229
      %293 = vmatpush1.bf16.msra.mxu0 %v228
      %294 = vmatprep.subr.bf16.mxu0 %v231
      %295 = vmatpush1.bf16.msra.mxu0 %v230
      %296 = vmatprep.mubr.bf16.mxu0 %v101
      %297 = vmatmul.mubr.bf16.gmra.mrb[0].mxu0 %v100
      %v298 = vpop.f32.mrb[0].mxu0
      %v299 = vadd.f32 0.0, %v298
      %v300 = vpop.f32.mrb[0].mxu0
      %v301 = vadd.f32 0.0, %v300
      %v302 = vpop.f32.mrb[0].mxu0
      %v303 = vadd.f32 0.0, %v302
      %v304 = vpop.f32.mrb[0].mxu0
      %v305 = vadd.f32 0.0, %v304
      %306 = vdwg.mxu0
      %v307 = vadd.f32 %v56, %v299
      %v308 = vadd.f32 %v57, %v301
      %v309 = vadd.f32 %v58, %v303
      %v310 = vadd.f32 %v59, %v305
      %311 = vst [vmem:[#allocation2] sm:$0xff] %v307
      %312 = vst [vmem:[#allocation2 + $0x8] sm:$0xff] %v308
      %313 = vst [vmem:[#allocation2 + $0x10] sm:$0xff] %v309
      %314 = vst [vmem:[#allocation2 + $0x18] sm:$0xff] %v310
    $region25: #{tpu_custom_call.1} parent=1 // pred_fallthru
      _
    // Predicated region
    $region26: #{tpu_custom_call.1} parent=1 // pred_check
      %p315 = pneg %p42
    $region27: #{tpu_custom_call.1} parent=1 // pred_check_branch
      %317 = sbr.rel (%p315) target = $region29
    $region28: #{tpu_custom_call.1} parent=1 // pred_region
      %v318 = vld [vmem:[#allocation2] sm:$0xff]
      %v319 = vld [vmem:[#allocation2 + $0x8] sm:$0xff]
      %v320 = vld [vmem:[#allocation2 + $0x10] sm:$0xff]
      %v321 = vld [vmem:[#allocation2 + $0x18] sm:$0xff]
      %322 = vst [vmem:[#allocation10] sm:$0xff] %v318
      %323 = vst [vmem:[#allocation10 + $0x8] sm:$0xff] %v319
      %324 = vst [vmem:[#allocation10 + $0x10] sm:$0xff] %v320
      %325 = vst [vmem:[#allocation10 + $0x18] sm:$0xff] %v321
    $region29: #{tpu_custom_call.1} parent=1 // pred_fallthru
      _
    // Predicated region
    $region30: #{tpu_custom_call.1} parent=1 // pred_check
      _
    $region31: #{tpu_custom_call.1} parent=1 // pred_check_branch
      %327 = sbr.rel (0) target = $region33
    $region32: #{tpu_custom_call.1} parent=1 // pred_region
      %s329 = ssub.s32 512, 512
      %330 = vsyncadd [#allocation7], %s329
      %s331 = sshll.u32 [#allocation10], 4
      %s332 = int_to_ptr.vmem [resolvable:$true] %s331
      %337 = dma.vmem_to_hbm [thread:$0]  %s332, 512, %s3, [#allocation7], 256, 256, 16
    $region33: #{tpu_custom_call.1} parent=1 // pred_fallthru
      _
    // Predicated region
    $region34: #{tpu_custom_call.1} parent=1 // pred_check
      _
    $region35: #{tpu_custom_call.1} parent=1 // pred_check_branch
      %339 = sbr.rel (0) target = $region37
    $region36: #{tpu_custom_call.1} parent=1 // pred_region
      %340 = dma.done [#allocation7], 512
    $region37: #{tpu_custom_call.1} parent=1 // pred_fallthru
      _
    %341 = vsyncpa [#allocation6], 1
    %342 = vsyncpa [#allocation9], 1
    %343 = vsyncpa [#allocation7], 1

</llo_original>
